<compile_context>
chip_gen: v6e
topology: v6e:2x2x1
jax: 0.10.0
libtpu: 0.0.40
codegen_flags: <defaults>
</compile_context>

<pallas_src>
import numpy as np
import jax
import jax.numpy as jnp
from jax.experimental import pallas as pl
from jax.experimental.pallas import tpu as pltpu


def _round_up(a, m):
    return (a + m - 1) // m * m


def _round_down(a, m):
    return a // m * m


def _make_tv_kernel(W, hw_pad, rows, bc, need_row_mask):
    def kernel(x_ref, scale_ref, out_ref):
        x = x_ref[...]                                   # (rows, hw_pad), native dtype

        if need_row_mask:
            # Last grid block extends past bc rows: BlockSpec out-of-bounds data
            # is unspecified (possibly NaN/Inf), so zero it BEFORE any arithmetic
            # (NaN * 0 would still poison the sum).
            row = (jax.lax.broadcasted_iota(jnp.int32, (rows, 1), 0)
                   + pl.program_id(0) * rows)
            x = jnp.where(row < bc, x, jnp.zeros_like(x))

        # Pre-scaled seam masks: 1/count_h (resp. 1/count_w) on valid lanes,
        # 0 on wrap-around / seam / lane-pad positions.
        hs = scale_ref[0:1, :]                           # (1, hw_pad) f32
        ws = scale_ref[1:2, :]

        # Cyclic neighbours along the flattened (H*W) lane axis (XLU):
        #   x_down[i]  == x[i + W]   (pixel one image-row below)
        #   x_right[i] == x[i + 1]   (pixel one column to the right)
        x_down = pltpu.roll(x, hw_pad - W, axis=1)
        dh = (x_down - x).astype(jnp.float32)            # native-dtype sub, f32 square
        acc = dh * dh * hs
        x_right = pltpu.roll(x, hw_pad - 1, axis=1)
        dw = (x_right - x).astype(jnp.float32)
        acc = acc + dw * dw * ws

        # Stop the in-kernel reduction at one lane-dense (8,128) vreg of partial
        # sums (pure VPU vreg adds); the tiny final combine happens in JAX.
        acc = acc.reshape(rows // 8, 8, hw_pad // 128, 128)
        out_ref[...] = jnp.sum(acc, axis=(0, 2))[None]

    return kernel


def tv_loss(x, *, target_workset_bytes=28 * 1024 * 1024):
    """TV loss matching the given PyTorch TVLoss.forward.

    Semantics (as in the spec): count_h=(H-1)*W, count_w=H*(W-1), no channel
    factor, weight==1. x: (B, C, H, W). Returns a float32 scalar.
    """
    B, C, H, W = x.shape
    HW = H * W
    bc = B * C
    itemsize = x.dtype.itemsize
    sub_tile = {4: 8, 2: 16, 1: 32}.get(itemsize, 8)     # dtype sublane tile

    hw_pad = _round_up(HW, 128)                          # lane-dense flattened spatial axis

    xf = x.reshape(bc, HW)                               # metadata-only reshape, no copy
    if hw_pad != HW:
        # Lane tail only (H*W not a multiple of 128): pad the flattened-pixel
        # axis with zeros so seam masks stay valid.  Power-of-two spatial sizes
        # never take this branch.
        xf = jnp.pad(xf, ((0, 0), (0, hw_pad - HW)))

    # Rows (images) per grid step, sized by the f32 working set of the kernel
    # intermediates (x + one rolled copy + extra double-buffered input block in
    # native dtype, plus dh/dw/acc peak in f32), aligned to the sublane tile.
    per_elem_bytes = 3 * itemsize + 12
    rows = max(sub_tile,
               _round_down(target_workset_bytes // max(hw_pad * per_elem_bytes, 1),
                           sub_tile))
    bc_ceil = _round_up(bc, sub_tile)
    if bc_ceil >= 2 * sub_tile:
        # Keep >= 2 grid steps so both v7x TensorCores get work.
        rows = min(rows, _round_up(max(bc_ceil // 2, sub_tile), sub_tile))
    rows = int(min(rows, bc_ceil))
    grid = (bc + rows - 1) // rows
    need_row_mask = (grid * rows != bc)

    # Pre-scaled seam masks, built once on the host (tiny, stays VMEM-resident
    # across grid steps since its block index never changes).
    count_h = (H - 1) * W
    count_w = H * (W - 1)
    # TODO(synk): degenerate H==1 / W==1 shapes give a 0 contribution here,
    # whereas the PyTorch module returns NaN (0/0); guarded to avoid a host-side
    # ZeroDivisionError.
    inv_ch = (1.0 / count_h) if count_h else 0.0
    inv_cw = (1.0 / count_w) if count_w else 0.0
    lane = np.arange(hw_pad)
    h_scale = np.where(lane < count_h, inv_ch, 0.0)
    w_scale = np.where(((lane % W) != (W - 1)) & (lane < HW), inv_cw, 0.0)
    scales = np.stack([h_scale, w_scale], axis=0).astype(np.float32)   # (2, hw_pad)

    kernel = _make_tv_kernel(W, hw_pad, rows, bc, need_row_mask)

    cost = pl.CostEstimate(
        flops=8 * bc * hw_pad,
        transcendentals=0,
        bytes_accessed=bc * hw_pad * itemsize + scales.size * 4 + grid * 8 * 128 * 4,
    )

    partials = pl.pallas_call(
        kernel,
        out_shape=jax.ShapeDtypeStruct((grid, 8, 128), jnp.float32),
        grid_spec=pltpu.PrefetchScalarGridSpec(
            num_scalar_prefetch=0,
            grid=(grid,),
            in_specs=[
                pl.BlockSpec((rows, hw_pad), lambda i: (i, 0)),
                pl.BlockSpec((2, hw_pad), lambda i: (0, 0)),
            ],
            out_specs=pl.BlockSpec((1, 8, 128), lambda i: (i, 0, 0)),
        ),
        compiler_params=pltpu.CompilerParams(
            dimension_semantics=("parallel",),
            vmem_limit_bytes=48 * 1024 * 1024,
        ),
        cost_estimate=cost,
    )(xf, jnp.asarray(scales))

    # Masks already carry 1/count_h and 1/count_w; only 2/B remains.
    return 2.0 * jnp.sum(partials) / B


def tv_loss_ref(x):
    """Pure-JAX reference mirroring the PyTorch code."""
    x = x.astype(jnp.float32)
    B, _, H, W = x.shape
    count_h = (H - 1) * W
    count_w = H * (W - 1)
    h_tv = jnp.sum((x[:, :, 1:, :] - x[:, :, : H - 1, :]) ** 2)
    w_tv = jnp.sum((x[:, :, :, 1:] - x[:, :, :, : W - 1]) ** 2)
    return 2.0 * (h_tv / count_h + w_tv / count_w) / B


if __name__ == "__main__":
    key = jax.random.PRNGKey(0)
    # Small NCHW input consistent with the module's forward: batch=2, channels=4,
    # spatial 16x16.
    x = jax.random.normal(key, (2, 4, 16, 16), dtype=jnp.float32)

    out = jax.block_until_ready(tv_loss(x))
    ref = jax.block_until_ready(tv_loss_ref(x))

    assert jnp.allclose(out, ref, rtol=1e-4, atol=1e-6), (out, ref)
    print("KERNEL_OK")
</pallas_src>

<mosaic_0001>
module attributes {stable_mosaic.version = 11 : i64} {
  func.func @kernel(%arg0: i32, %arg1: memref<8x256xf32, #tpu.memory_space<vmem>>, %arg2: memref<2x256xf32, #tpu.memory_space<vmem>>, %arg3: memref<1x8x128xf32, #tpu.memory_space<vmem>>) attributes {dimension_semantics = [#tpu.dimension_semantics<parallel>], iteration_bounds = array<i64: 1>, scalar_prefetch = 0 : i64, scratch_operands = 0 : i64, tpu.core_type = #tpu.core_type<tc>, window_params = [{transform_indices = @transform_0, window_bounds = array<i64: 8, 256>}, {pipeline_mode = #tpu.pipeline_mode<synchronous>, transform_indices = @transform_1, window_bounds = array<i64: 2, 256>}, {transform_indices = @transform_2, window_bounds = array<i64: 1, 8, 128>}]} {
    %c0 = arith.constant 0 : index
    %c0_0 = arith.constant 0 : index
    %0 = vector.load %arg1[%c0, %c0_0] : memref<8x256xf32, #tpu.memory_space<vmem>>, vector<8x256xf32>
    %c0_1 = arith.constant 0 : index
    %c0_2 = arith.constant 0 : index
    %1 = vector.load %arg2[%c0_1, %c0_2] : memref<2x256xf32, #tpu.memory_space<vmem>>, vector<1x256xf32>
    %c1 = arith.constant 1 : index
    %c0_3 = arith.constant 0 : index
    %2 = vector.load %arg2[%c1, %c0_3] : memref<2x256xf32, #tpu.memory_space<vmem>>, vector<1x256xf32>
    %c240_i32 = arith.constant 240 : i32
    %3 = tpu.dynamic_rotate %0 by %c240_i32 dim 1 : vector<8x256xf32>, i32 -> vector<8x256xf32>
    %4 = arith.subf %3, %0 : vector<8x256xf32>
    %5 = arith.mulf %4, %4 : vector<8x256xf32>
    %6 = vector.broadcast %1 : vector<1x256xf32> to vector<8x256xf32>
    %7 = arith.mulf %5, %6 : vector<8x256xf32>
    %c255_i32 = arith.constant 255 : i32
    %8 = tpu.dynamic_rotate %0 by %c255_i32 dim 1 : vector<8x256xf32>, i32 -> vector<8x256xf32>
    %9 = arith.subf %8, %0 : vector<8x256xf32>
    %10 = arith.mulf %9, %9 : vector<8x256xf32>
    %11 = vector.broadcast %2 : vector<1x256xf32> to vector<8x256xf32>
    %12 = arith.mulf %10, %11 : vector<8x256xf32>
    %13 = arith.addf %7, %12 : vector<8x256xf32>
    %14 = vector.shape_cast %13 : vector<8x256xf32> to vector<1x8x2x128xf32>
    %cst = arith.constant dense<0.000000e+00> : vector<8x128xf32>
    %15 = vector.multi_reduction <add>, %14, %cst [0, 2] : vector<1x8x2x128xf32> to vector<8x128xf32>
    %16 = vector.shape_cast %15 : vector<8x128xf32> to vector<1x8x128xf32>
    %c0_4 = arith.constant 0 : index
    %c0_5 = arith.constant 0 : index
    %c0_6 = arith.constant 0 : index
    %17 = vector.load %arg3[%c0_4, %c0_5, %c0_6] : memref<1x8x128xf32, #tpu.memory_space<vmem>>, vector<1x8x128xf32>
    tpu.vector_store %arg3[%c0_4, %c0_5, %c0_6], %16 {strides = array<i32>} : memref<1x8x128xf32, #tpu.memory_space<vmem>>, vector<1x8x128xf32>,
    return
  }
  func.func @transform_0(%arg0: i32) -> (i32, i32) {
    %c0_i32 = arith.constant 0 : i32
    %c0_i32_0 = arith.constant 0 : i32
    return %arg0, %c0_i32 : i32, i32
  }
  func.func @transform_1(%arg0: i32) -> (i32, i32) {
    %c0_i32 = arith.constant 0 : i32
    %c0_i32_0 = arith.constant 0 : i32
    %c0_i32_1 = arith.constant 0 : i32
    return %c0_i32, %c0_i32_0 : i32, i32
  }
  func.func @transform_2(%arg0: i32) -> (i32, i32, i32) {
    %c0_i32 = arith.constant 0 : i32
    %c0_i32_0 = arith.constant 0 : i32
    %c0_i32_1 = arith.constant 0 : i32
    return %arg0, %c0_i32, %c0_i32_0 : i32, i32, i32
  }
}

</mosaic_0001>

<llo_original>
// kernel: tpu_custom_call.1
$region0: #{tpu_custom_call.1}
  #allocation0 [shape = 'u32[]', space=smem, size = 0x4, offset = 0x4, fixed_abs, tag = 'smem constant byte address 0x4 - core index']
  #allocation1 [shape = 'u32[144,128]{1,0:T(1,128)}', space=vmem, size = 0x12000, scoped, tag = 'internal scratch']
  %s0 = inlined_call_operand.hbm [shape: f32[8,256], index: 0, kind: input, shape index: {}]
  %s1 = inlined_call_operand.hbm [shape: f32[2,256], index: 1, kind: input, shape index: {}]
  %s2 = inlined_call_operand.hbm [shape: f32[1,8,128], index: 2, kind: output, shape index: {}]
  %s3 = sld [smem:[#allocation0]]
  $region26: #{tpu_custom_call.1} parent=0
    _
  %s5 = ssub.s32 1, %s3
  %s6 = scalar_select 0, %s5, %s3
  $region1: #{tpu_custom_call.1} parent=0
    #allocation2 [shape = 'u8[8192]{0}', space=vmem, size = 0x2000, scoped, tag = 'input window, operand 0, single buffered']
    #allocation3 [shape = 's32[1]{0}', space=sflag, size = 0x4, scoped, tag = 'scoped memory for tpu_custom_call.1']
    #allocation4 [shape = 's32[1]{0}', space=sflag, size = 0x4, scoped, tag = 'scoped memory for tpu_custom_call.1']
    #allocation5 [shape = 'u8[2048]{0}', space=vmem, size = 0x800, scoped, tag = 'input window, operand 1, single buffered']
    #allocation6 [shape = 's32[1]{0}', space=sflag, size = 0x4, scoped, tag = 'scoped memory for tpu_custom_call.1']
    #allocation7 [shape = 'u8[4096]{0}', space=vmem, size = 0x1000, scoped, tag = 'output window, operand 0, single buffered']
    %7 = vsyncpa [#allocation3], 0
    %8 = vsyncpa [#allocation6], 0
    %9 = vsyncpa [#allocation4], 0
    // Predicated region
    $region2: #{tpu_custom_call.1} parent=1 // pred_check
      _
    $region3: #{tpu_custom_call.1} parent=1 // pred_check_branch
      %11 = sbr.rel (0) target = $region5
    $region4: #{tpu_custom_call.1} parent=1 // pred_region
      %s13 = ssub.s32 256, 256
      %14 = vsyncadd [#allocation3], %s13
      %s16 = sshll.u32 [#allocation2], 4
      %s17 = int_to_ptr.vmem [resolvable:$true] %s16
      %19 = dma.hbm_to_vmem [thread:$0]  %s0, 256, %s17, [#allocation3]
    $region5: #{tpu_custom_call.1} parent=1 // pred_fallthru
      _
    // Predicated region
    $region6: #{tpu_custom_call.1} parent=1 // pred_check
      _
    $region7: #{tpu_custom_call.1} parent=1 // pred_check_branch
      %21 = sbr.rel (0) target = $region9
    $region8: #{tpu_custom_call.1} parent=1 // pred_region
      %s23 = ssub.s32 64, 64
      %24 = vsyncadd [#allocation6], %s23
      %s26 = sshll.u32 [#allocation5], 4
      %s27 = int_to_ptr.vmem [resolvable:$true] %s26
      %29 = dma.hbm_to_vmem [thread:$0]  %s1, 64, %s27, [#allocation6]
    $region9: #{tpu_custom_call.1} parent=1 // pred_fallthru
      _
    // Predicated region
    $region10: #{tpu_custom_call.1} parent=1 // pred_check
      _
    $region11: #{tpu_custom_call.1} parent=1 // pred_check_branch
      %31 = sbr.rel (0) target = $region13
    $region12: #{tpu_custom_call.1} parent=1 // pred_region
      %32 = dma.done [#allocation3], 256
    $region13: #{tpu_custom_call.1} parent=1 // pred_fallthru
      _
    // Predicated region
    $region14: #{tpu_custom_call.1} parent=1 // pred_check
      _
    $region15: #{tpu_custom_call.1} parent=1 // pred_check_branch
      %34 = sbr.rel (0) target = $region17
    $region16: #{tpu_custom_call.1} parent=1 // pred_region
      %35 = dma.done [#allocation6], 64
    $region17: #{tpu_custom_call.1} parent=1 // pred_fallthru
      _
    %v36 = vld [vmem:[#allocation2] sm:$0xff]
    %v37 = vld [vmem:[#allocation2 + $0x8] sm:$0xff]
    %v38 = vld [vmem:[#allocation5] ss:$2 sm:$0x3]
    %s39 = scalar_lea.vmem [#allocation5], 1
    %v40 = vld [vmem:[%s39] ss:$2 sm:$0x3]
    %41 = vrot.lane.b32.xlu0 %v36, 112
    %v42 = vpop.permute.xlu0 %41
    %43 = vrot.lane.b32.xlu0 %v37, 112
    %v44 = vpop.permute.xlu0 %43
    %v45 = vlaneseq
    %v46 = vand.u32 %v45, 127
    %vm47 = vcmp.lt.s32.totalorder %v46, 112
    %v48 = vsel %vm47, %v42, %v44
    %v49 = vsel %vm47, %v44, %v42
    %v50 = vsub.f32 %v48, %v36
    %v51 = vsub.f32 %v49, %v37
    %v52 = vmul.f32 %v50, %v50
    %v53 = vmul.f32 %v51, %v51
    %v55 = vlaneseq
    %v56 = vshrl.u32 %v55, 7
    %v57 = vsub.s32 0, %v56
    %v58 = vrot.slane %v38, %v57
    %v59 = vlaneseq
    %v60 = vshrl.u32 %v59, 7
    %v61 = vsub.s32 1, %v60
    %v62 = vrot.slane %v38, %v61
    %v65 = vmul.f32 %v52, %v58
    %v66 = vmul.f32 %v53, %v62
    %67 = vrot.lane.b32.xlu0 %v36, 127
    %v68 = vpop.permute.xlu0 %67
    %69 = vrot.lane.b32.xlu0 %v37, 127
    %v70 = vpop.permute.xlu0 %69
    %vm71 = vcmp.lt.s32.totalorder %v46, 127
    %v72 = vsel %vm71, %v68, %v70
    %v73 = vsel %vm71, %v70, %v68
    %v74 = vsub.f32 %v72, %v36
    %v75 = vsub.f32 %v73, %v37
    %v76 = vmul.f32 %v74, %v74
    %v77 = vmul.f32 %v75, %v75
    %v79 = vlaneseq
    %v80 = vshrl.u32 %v79, 7
    %v81 = vsub.s32 0, %v80
    %v82 = vrot.slane %v40, %v81
    %v83 = vlaneseq
    %v84 = vshrl.u32 %v83, 7
    %v85 = vsub.s32 1, %v84
    %v86 = vrot.slane %v40, %v85
    %v89 = vmul.f32 %v76, %v82
    %v90 = vmul.f32 %v77, %v86
    %v91 = vadd.f32 %v65, %v89
    %v92 = vadd.f32 %v66, %v90
    %v93 = vcombine.high %v91, 0.0
    %v95 = vunpack.c.l.s4 1983009808
    %v96 = vunpack.c.0.s8 %v95
    %v97 = vlaneseq
    %v98 = vshrl.u32 %v97, 7
    %v99 = vsub.s32 %v96, %v98
    %v100 = vrot.slane %v91, %v99
    %v102 = vunpack.c.l.s4 1983009808
    %v103 = vunpack.c.0.s8 %v102
    %v104 = vlaneseq
    %v105 = vshrl.u32 %v104, 7
    %v106 = vsub.s32 %v103, %v105
    %v107 = vrot.slane %v93, %v106
    %v108 = vcombine.high %v92, 0.0
    %v110 = vunpack.c.l.s4 1983009808
    %v111 = vunpack.c.0.s8 %v110
    %v112 = vlaneseq
    %v113 = vshrl.u32 %v112, 7
    %v114 = vsub.s32 %v111, %v113
    %v115 = vrot.slane %v92, %v114
    %v117 = vunpack.c.l.s4 1983009808
    %v118 = vunpack.c.0.s8 %v117
    %v119 = vlaneseq
    %v120 = vshrl.u32 %v119, 7
    %v121 = vsub.s32 %v118, %v120
    %v122 = vrot.slane %v108, %v121
    %v123 = vcombine.low %v100, %v115
    %v124 = vcombine.high %v100, %v115
    %v126 = vunpack.c.l.s4 1934713408
    %v127 = vunpack.c.0.s8 %v126
    %v128 = vlaneseq
    %v129 = vshrl.u32 %v128, 7
    %v130 = vsub.s32 %v127, %v129
    %v131 = vrot.slane %v123, %v130
    %v133 = vunpack.c.l.s4 1934713408
    %v134 = vunpack.c.0.s8 %v133
    %v135 = vlaneseq
    %v136 = vshrl.u32 %v135, 7
    %v137 = vsub.s32 %v134, %v136
    %v138 = vrot.slane %v124, %v137
    %v139 = vcombine.low %v107, %v122
    %v140 = vcombine.high %v107, %v122
    %v142 = vunpack.c.l.s4 1934713408
    %v143 = vunpack.c.0.s8 %v142
    %v144 = vlaneseq
    %v145 = vshrl.u32 %v144, 7
    %v146 = vsub.s32 %v143, %v145
    %v147 = vrot.slane %v139, %v146
    %v149 = vunpack.c.l.s4 1934713408
    %v150 = vunpack.c.0.s8 %v149
    %v151 = vlaneseq
    %v152 = vshrl.u32 %v151, 7
    %v153 = vsub.s32 %v150, %v152
    %v154 = vrot.slane %v140, %v153
    %v155 = vcombine.high %v131, 0.0
    %v156 = vcombine.high %v138, 0.0
    %v157 = vcombine.high %v147, 0.0
    %v158 = vcombine.high %v154, 0.0
    %vm159 = vcmask 1041408
    %v160 = vsel %vm159, %v131, 0.0
    %v161 = vrot.slane %v160, 4
    %v162 = vadd.f32 %v160, %v161
    %v163 = vrot.slane %v162, 2
    %v164 = vadd.f32 %v162, %v163
    %v165 = vrot.slane %v164, 1
    %v166 = vadd.f32 %v164, %v165
    %v167 = vsel %vm159, %v155, 0.0
    %v168 = vrot.slane %v167, 4
    %v169 = vadd.f32 %v167, %v168
    %v170 = vrot.slane %v169, 2
    %v171 = vadd.f32 %v169, %v170
    %v172 = vrot.slane %v171, 1
    %v173 = vadd.f32 %v171, %v172
    %v174 = vsel %vm159, %v138, 0.0
    %v175 = vrot.slane %v174, 4
    %v176 = vadd.f32 %v174, %v175
    %v177 = vrot.slane %v176, 2
    %v178 = vadd.f32 %v176, %v177
    %v179 = vrot.slane %v178, 1
    %v180 = vadd.f32 %v178, %v179
    %v181 = vsel %vm159, %v156, 0.0
    %v182 = vrot.slane %v181, 4
    %v183 = vadd.f32 %v181, %v182
    %v184 = vrot.slane %v183, 2
    %v185 = vadd.f32 %v183, %v184
    %v186 = vrot.slane %v185, 1
    %v187 = vadd.f32 %v185, %v186
    %v188 = vsel %vm159, %v147, 0.0
    %v189 = vrot.slane %v188, 4
    %v190 = vadd.f32 %v188, %v189
    %v191 = vrot.slane %v190, 2
    %v192 = vadd.f32 %v190, %v191
    %v193 = vrot.slane %v192, 1
    %v194 = vadd.f32 %v192, %v193
    %v195 = vsel %vm159, %v157, 0.0
    %v196 = vrot.slane %v195, 4
    %v197 = vadd.f32 %v195, %v196
    %v198 = vrot.slane %v197, 2
    %v199 = vadd.f32 %v197, %v198
    %v200 = vrot.slane %v199, 1
    %v201 = vadd.f32 %v199, %v200
    %v202 = vsel %vm159, %v154, 0.0
    %v203 = vrot.slane %v202, 4
    %v204 = vadd.f32 %v202, %v203
    %v205 = vrot.slane %v204, 2
    %v206 = vadd.f32 %v204, %v205
    %v207 = vrot.slane %v206, 1
    %v208 = vadd.f32 %v206, %v207
    %v209 = vsel %vm159, %v158, 0.0
    %v210 = vrot.slane %v209, 4
    %v211 = vadd.f32 %v209, %v210
    %v212 = vrot.slane %v211, 2
    %v213 = vadd.f32 %v211, %v212
    %v214 = vrot.slane %v213, 1
    %v215 = vadd.f32 %v213, %v214
    %vm224 = vcmask 1041409
    %v225 = vsel %vm224, %v173, %v166
    %vm226 = vcmask 1042434
    %v227 = vsel %vm226, %v180, %v225
    %vm228 = vcmask 1043459
    %v229 = vsel %vm228, %v187, %v227
    %vm230 = vcmask 1044484
    %v231 = vsel %vm230, %v194, %v229
    %vm232 = vcmask 1045509
    %v233 = vsel %vm232, %v201, %v231
    %vm234 = vcmask 1046534
    %v235 = vsel %vm234, %v208, %v233
    %vm236 = vcmask 1047559
    %v237 = vsel %vm236, %v215, %v235
    %239 = vst [vmem:[#allocation7] sm:$0xff] %v237
    // Predicated region
    $region18: #{tpu_custom_call.1} parent=1 // pred_check
      _
    $region19: #{tpu_custom_call.1} parent=1 // pred_check_branch
      %241 = sbr.rel (0) target = $region21
    $region20: #{tpu_custom_call.1} parent=1 // pred_region
      %s243 = ssub.s32 128, 128
      %244 = vsyncadd [#allocation4], %s243
      %s246 = sshll.u32 [#allocation7], 4
      %s247 = int_to_ptr.vmem [resolvable:$true] %s246
      %249 = dma.vmem_to_hbm [thread:$0]  %s247, 128, %s2, [#allocation4]
    $region21: #{tpu_custom_call.1} parent=1 // pred_fallthru
      _
    // Predicated region
    $region22: #{tpu_custom_call.1} parent=1 // pred_check
      _
    $region23: #{tpu_custom_call.1} parent=1 // pred_check_branch
      %251 = sbr.rel (0) target = $region25
    $region24: #{tpu_custom_call.1} parent=1 // pred_region
      %252 = dma.done [#allocation4], 128
    $region25: #{tpu_custom_call.1} parent=1 // pred_fallthru
      _
    %253 = vsyncpa [#allocation3], 1
    %254 = vsyncpa [#allocation6], 1
    %255 = vsyncpa [#allocation4], 1

</llo_original>
